<compile_context>
chip_gen: v7x
topology: tpu7x:2x2x1
jax: 0.10.0
libtpu: 0.0.40
codegen_flags: <defaults>
</compile_context>

<pallas_src>
import jax
import jax.numpy as jnp
from jax.experimental import pallas as pl
from jax.experimental.pallas import tpu as pltpu


def _brightness_kernel(factor_ref, x_ref, o_ref):
    # Pure VPU elementwise hot path: scale by a runtime scalar, then clamp.
    x = x_ref[...]
    f = factor_ref[0].astype(x.dtype)            # free scalar (SMEM) read
    y = x * f
    # Clamp kept for exact adjust_brightness semantics on arbitrary inputs;
    # the kernel is HBM-bound so the extra VPU ops cost ~0 wall clock.
    o_ref[...] = jnp.clip(y,
                          jnp.asarray(0.0, x.dtype),
                          jnp.asarray(1.0, x.dtype))


def _round_up(x, m):
    return ((x + m - 1) // m) * m


def brightness(img, M):
    """Pallas equivalent of Brightness(M).forward(img).

    img: float array (any rank, e.g. NCHW), values expected in [0, 1].
    M:   augmentation magnitude (scalar, Python float/int).
    """
    # TODO(synk): integer image dtypes (uint8) would need a 255 clamp bound and
    # round-to-nearest; this implements the float-image path used by ctaugment.
    factor_val = (M / 16.0 * 10.0) / 5.0         # == M / 8
    factor = jnp.asarray([factor_val], dtype=jnp.float32)   # runtime operand

    orig_shape = img.shape
    dtype = img.dtype
    total = int(img.size)

    # ---- lane-dense 2D view -------------------------------------------------
    LANE_COLS = 512                              # 4 x 128 lanes, unmasked vst
    itemsize = jnp.dtype(dtype).itemsize
    sublane = {4: 8, 2: 16, 1: 32}.get(itemsize, 8)   # dtype-aware min sublanes

    rows = pl.cdiv(total, LANE_COLS)

    # ~2 MiB blocks: big enough to amortize per-step overhead and reach 85%+
    # of HBM BW, small enough that 4 double-buffered copies fit scoped VMEM
    # everywhere (including v7x's 32 MiB default).
    target_block_bytes = 2 * 1024 * 1024
    block_r_cap = max(sublane, target_block_bytes // (LANE_COLS * itemsize))
    # Aim for >= ~8 grid steps (v7x megacore) when there is enough data, but
    # never below the sublane minimum nor above the 2 MiB cap.
    block_r = max(sublane,
                  min(block_r_cap, _round_up(pl.cdiv(rows, 8), sublane)))

    # Pad the flat view up to a whole number of blocks (ragged-tail handling).
    padded_rows = _round_up(rows, block_r)
    padded_total = padded_rows * LANE_COLS

    flat = img.reshape(-1)
    if padded_total != total:
        flat = jnp.pad(flat, (0, padded_total - total))
    x2d = flat.reshape(padded_rows, LANE_COLS)

    grid = (padded_rows // block_r,)

    out2d = pl.pallas_call(
        _brightness_kernel,
        out_shape=jax.ShapeDtypeStruct((padded_rows, LANE_COLS), dtype),
        grid_spec=pltpu.PrefetchScalarGridSpec(
            num_scalar_prefetch=0,
            grid=grid,
            in_specs=[
                # factor: whole (1,) array lives in SMEM, read as a scalar.
                pl.BlockSpec(memory_space=pltpu.MemorySpace.SMEM),
                # image slab: lane-dense ~2 MiB tiles.
                pl.BlockSpec((block_r, LANE_COLS), lambda i: (i, 0)),
            ],
            out_specs=pl.BlockSpec((block_r, LANE_COLS), lambda i: (i, 0)),
        ),
        compiler_params=pltpu.CompilerParams(
            dimension_semantics=("parallel",)),
    )(factor, x2d)

    return out2d.reshape(-1)[:total].reshape(orig_shape)


if __name__ == "__main__":
    key = jax.random.PRNGKey(0)
    # Small NCHW image batch, values in [0, 1] like a normalized image tensor.
    x = jax.random.uniform(key, (2, 4, 16, 16), dtype=jnp.float32)

    M = 12.0  # magnitude, as in ctaugment (0..16 range)
    out = brightness(x, M)
    out = jax.block_until_ready(out)

    # Reference check in plain JAX (same math torchvision does for floats).
    factor = (M / 16.0 * 10.0) / 5.0
    ref = jnp.clip(x * factor, 0.0, 1.0)
    assert out.shape == x.shape and out.dtype == x.dtype
    assert jnp.allclose(out, ref, atol=1e-6), "mismatch vs reference"

    # Second magnitude + a ragged (non-multiple-of-block) shape to exercise the
    # no-recompile scalar path and the padded-tail handling.
    x2 = jax.random.uniform(jax.random.PRNGKey(1), (1, 3, 13, 7),
                            dtype=jnp.float32)
    out2 = jax.block_until_ready(brightness(x2, 5.0))
    ref2 = jnp.clip(x2 * (5.0 / 8.0), 0.0, 1.0)
    assert jnp.allclose(out2, ref2, atol=1e-6), "mismatch vs reference (ragged)"

    # bf16 path (checks the dtype-aware sublane sizing).
    x3 = jax.random.uniform(jax.random.PRNGKey(2), (2, 3, 32, 32),
                            dtype=jnp.float32).astype(jnp.bfloat16)
    out3 = jax.block_until_ready(brightness(x3, 9.0))
    ref3 = jnp.clip(x3.astype(jnp.float32) * (9.0 / 8.0), 0.0, 1.0)
    assert out3.dtype == jnp.bfloat16
    assert jnp.allclose(out3.astype(jnp.float32), ref3, atol=1e-2), \
        "mismatch vs reference (bf16)"

    print("KERNEL_OK")
</pallas_src>

<mosaic_0001>
module attributes {stable_mosaic.version = 11 : i64} {
  func.func @_brightness_kernel(%arg0: i32, %arg1: memref<1xf32, #tpu.memory_space<smem>>, %arg2: memref<8x512xf32, #tpu.memory_space<vmem>>, %arg3: memref<8x512xf32, #tpu.memory_space<vmem>>) attributes {dimension_semantics = [#tpu.dimension_semantics<parallel>], iteration_bounds = array<i64: 1>, scalar_prefetch = 0 : i64, scratch_operands = 0 : i64, tpu.core_type = #tpu.core_type<tc>, window_params = [{transform_indices = @transform_0, window_bounds = array<i64: 1>}, {transform_indices = @transform_1, window_bounds = array<i64: 8, 512>}, {transform_indices = @transform_2, window_bounds = array<i64: 8, 512>}]} {
    %c0 = arith.constant 0 : index
    %c0_0 = arith.constant 0 : index
    %0 = vector.load %arg2[%c0, %c0_0] : memref<8x512xf32, #tpu.memory_space<vmem>>, vector<8x512xf32>
    %c0_1 = arith.constant 0 : index
    %1 = memref.load %arg1[%c0_1] : memref<1xf32, #tpu.memory_space<smem>>
    %2 = vector.broadcast %1 : f32 to vector<8x512xf32>
    %3 = arith.mulf %0, %2 : vector<8x512xf32>
    %cst = arith.constant 0.000000e+00 : f32
    %cst_2 = arith.constant 1.000000e+00 : f32
    %4 = vector.broadcast %cst : f32 to vector<8x512xf32>
    %5 = arith.maximumf %4, %3 : vector<8x512xf32>
    %6 = vector.broadcast %cst_2 : f32 to vector<8x512xf32>
    %7 = arith.minimumf %6, %5 : vector<8x512xf32>
    %c0_3 = arith.constant 0 : index
    %c0_4 = arith.constant 0 : index
    %8 = vector.load %arg3[%c0_3, %c0_4] : memref<8x512xf32, #tpu.memory_space<vmem>>, vector<8x512xf32>
    tpu.vector_store %arg3[%c0_3, %c0_4], %7 {strides = array<i32>} : memref<8x512xf32, #tpu.memory_space<vmem>>, vector<8x512xf32>,
    return
  }
  func.func @transform_0(%arg0: i32) -> i32 {
    %c0_i32 = arith.constant 0 : i32
    %c0_i32_0 = arith.constant 0 : i32
    return %c0_i32 : i32
  }
  func.func @transform_1(%arg0: i32) -> (i32, i32) {
    %c0_i32 = arith.constant 0 : i32
    %c0_i32_0 = arith.constant 0 : i32
    return %arg0, %c0_i32 : i32, i32
  }
  func.func @transform_2(%arg0: i32) -> (i32, i32) {
    %c0_i32 = arith.constant 0 : i32
    %c0_i32_0 = arith.constant 0 : i32
    return %arg0, %c0_i32 : i32, i32
  }
}

</mosaic_0001>

<llo_original>
// kernel: tpu_custom_call.1
$region0: #{tpu_custom_call.1}
  #allocation0 [shape = 'u32[]', space=smem, size = 0x4, offset = 0x4, fixed_abs, tag = 'smem constant byte address 0x4 - core index']
  #allocation1 [shape = 'u32[144,128]{1,0:T(1,128)}', space=vmem, size = 0x12000, scoped, tag = 'internal scratch']
  #allocation2 [shape = 'f32[1]{0:T(128)S(6)}', space=smem, size = 0x200, scoped, tag = 'scoped memory for tpu_custom_call.1']
  %s0 = inlined_call_operand.<no memory space> [shape: f32[1], index: 0, kind: input, shape index: {}]
  %s1 = inlined_call_operand.hbm [shape: f32[8,512], index: 1, kind: input, shape index: {}]
  %s2 = inlined_call_operand.hbm [shape: f32[8,512], index: 2, kind: output, shape index: {}]
  %s3 = sld [smem:[#allocation0]]
  $region22: #{tpu_custom_call.1} parent=0
    _
  %s5 = ssub.s32 1, %s3
  %s6 = scalar_select 0, %s5, %s3
  %7 = sst [smem:[#allocation2]] %s0
  $region1: #{tpu_custom_call.1} parent=0
    #allocation3 [shape = 'u8[16384]{0}', space=vmem, size = 0x4000, scoped, tag = 'input window, operand 1, single buffered']
    #allocation4 [shape = 's32[1]{0}', space=sflag, size = 0x4, scoped, tag = 'scoped memory for tpu_custom_call.1']
    #allocation5 [shape = 's32[1]{0}', space=sflag, size = 0x4, scoped, tag = 'scoped memory for tpu_custom_call.1']
    #allocation6 [shape = 'u8[16384]{0}', space=vmem, size = 0x4000, scoped, tag = 'output window, operand 0, single buffered']
    %8 = vsyncpa [#allocation4], 0
    %9 = vsyncpa [#allocation5], 0
    // Predicated region
    $region2: #{tpu_custom_call.1} parent=1 // pred_check
      _
    $region3: #{tpu_custom_call.1} parent=1 // pred_check_branch
      %11 = sbr.rel (0) target = $region5
    $region4: #{tpu_custom_call.1} parent=1 // pred_region
      _
    $region5: #{tpu_custom_call.1} parent=1 // pred_fallthru
      _
    // Predicated region
    $region6: #{tpu_custom_call.1} parent=1 // pred_check
      _
    $region7: #{tpu_custom_call.1} parent=1 // pred_check_branch
      %13 = sbr.rel (0) target = $region9
    $region8: #{tpu_custom_call.1} parent=1 // pred_region
      %s15 = ssub.s32 512, 512
      %16 = vsyncadd [#allocation4], %s15
      %s18 = sshll.u32 [#allocation3], 4
      %s19 = int_to_ptr.vmem [resolvable:$true] %s18
      %21 = dma.hbm_to_vmem [thread:$0]  %s1, 512, %s19, [#allocation4]
    $region9: #{tpu_custom_call.1} parent=1 // pred_fallthru
      _
    // Predicated region
    $region10: #{tpu_custom_call.1} parent=1 // pred_check
      _
    $region11: #{tpu_custom_call.1} parent=1 // pred_check_branch
      %23 = sbr.rel (0) target = $region13
    $region12: #{tpu_custom_call.1} parent=1 // pred_region
      %24 = dma.done [#allocation4], 512
    $region13: #{tpu_custom_call.1} parent=1 // pred_fallthru
      _
    %v25 = vld [vmem:[#allocation3] sm:$0xff]
    %v26 = vld [vmem:[#allocation3 + $0x8] sm:$0xff]
    %v27 = vld [vmem:[#allocation3 + $0x10] sm:$0xff]
    %v28 = vld [vmem:[#allocation3 + $0x18] sm:$0xff]
    %s29 = sld [smem:[#allocation2]]
    %v30 = vstv %s29
    %v31 = vmul.f32 %v25, %v30
    %v32 = vmul.f32 %v26, %v30
    %v33 = vmul.f32 %v27, %v30
    %v34 = vmul.f32 %v28, %v30
    %v35 = vmax.f32 %v31, 0.0
    %v36 = vmax.f32 %v32, 0.0
    %v37 = vmax.f32 %v33, 0.0
    %v38 = vmax.f32 %v34, 0.0
    %v39 = vmin.f32 %v35, 1.0
    %v40 = vmin.f32 %v36, 1.0
    %v41 = vmin.f32 %v37, 1.0
    %v42 = vmin.f32 %v38, 1.0
    %43 = vst [vmem:[#allocation6] sm:$0xff] %v39
    %44 = vst [vmem:[#allocation6 + $0x8] sm:$0xff] %v40
    %45 = vst [vmem:[#allocation6 + $0x10] sm:$0xff] %v41
    %46 = vst [vmem:[#allocation6 + $0x18] sm:$0xff] %v42
    // Predicated region
    $region14: #{tpu_custom_call.1} parent=1 // pred_check
      _
    $region15: #{tpu_custom_call.1} parent=1 // pred_check_branch
      %48 = sbr.rel (0) target = $region17
    $region16: #{tpu_custom_call.1} parent=1 // pred_region
      %s50 = ssub.s32 512, 512
      %51 = vsyncadd [#allocation5], %s50
      %s53 = sshll.u32 [#allocation6], 4
      %s54 = int_to_ptr.vmem [resolvable:$true] %s53
      %56 = dma.vmem_to_hbm [thread:$0]  %s54, 512, %s2, [#allocation5]
    $region17: #{tpu_custom_call.1} parent=1 // pred_fallthru
      _
    // Predicated region
    $region18: #{tpu_custom_call.1} parent=1 // pred_check
      _
    $region19: #{tpu_custom_call.1} parent=1 // pred_check_branch
      %58 = sbr.rel (0) target = $region21
    $region20: #{tpu_custom_call.1} parent=1 // pred_region
      %59 = dma.done [#allocation5], 512
    $region21: #{tpu_custom_call.1} parent=1 // pred_fallthru
      _
    %60 = vsyncpa [#allocation4], 1
    %61 = vsyncpa [#allocation5], 1

</llo_original>
